<compile_context>
chip_gen: v5e
topology: v5e:2x2
jax: 0.10.0
libtpu: 0.0.40
codegen_flags: <defaults>
</compile_context>

<pallas_src>
import jax
import jax.numpy as jnp
from jax.experimental import pallas as pl
from jax.experimental.pallas import tpu as pltpu

# ---------------- model hyper-params (small, consistent with the module) ----
B = 2               # batch
N = 8               # sequence length (tokens)
D = 32              # embedding dim
HEADS = 4           # attention heads
DH = D // HEADS     # head dim
MLP_RATIO = 4
HID = D * MLP_RATIO # mlp hidden dim
SCALE = DH ** -0.5
EPS = 1e-5

T = B * N           # all tokens handled in ONE grid step
G = B * HEADS       # (batch, head) groups for the batched attention dots


def block_kernel(x_ref, qkvw_ref, projw_ref, mlpw_ref, vec_ref, o_ref):
    x = x_ref[...]                                    # (T, D) f32

    vecs = vec_ref[...]                               # (8, 128) packed bias slab
    g1, b1 = vecs[0:1, 0:D], vecs[1:2, 0:D]
    bproj = vecs[2:3, 0:D]
    g2, b2 = vecs[3:4, 0:D], vecs[4:5, 0:D]
    bfc1 = vecs[5:6, 0:HID]
    bfc2 = vecs[6:7, 0:D]

    # ---------------- LayerNorm 1 ----------------
    mu = jnp.mean(x, axis=-1, keepdims=True)
    xc = x - mu
    var = jnp.mean(xc * xc, axis=-1, keepdims=True)
    h = xc * jax.lax.rsqrt(var + EPS) * g1 + b1       # (T, D)

    # ---------------- Multi-head self attention (heads batched) -------------
    # Replicate each batch's token block across its HEADS groups: (G, N, D).
    hb = jnp.broadcast_to(h.reshape(B, 1, N, D), (B, HEADS, N, D)).reshape(G, N, D)

    qkvw = qkvw_ref[...]                              # (G, D+1, 3*DH); row D = bias
    qkv = jnp.einsum('gnd,gde->gne', hb, qkvw[:, 0:D, :],
                     preferred_element_type=jnp.float32) + qkvw[:, D:D + 1, :]
    q = qkv[..., 0:DH]                                # (G, N, DH)
    k = qkv[..., DH:2 * DH]
    v = qkv[..., 2 * DH:3 * DH]

    s = jnp.einsum('gqd,gkd->gqk', q, k,
                   preferred_element_type=jnp.float32) * SCALE     # (G, N, N)
    m = jnp.max(s, axis=-1, keepdims=True)
    p = jnp.exp(s - m)
    p = p * pl.reciprocal(jnp.sum(p, axis=-1, keepdims=True), approx=True)
    o = jnp.einsum('gqk,gkd->gqd', p, v,
                   preferred_element_type=jnp.float32)             # (G, N, DH)

    # Per-head output projection; the head concatenation is folded into a sum
    # over heads of (o_h @ Wproj[h*DH:(h+1)*DH, :]).
    op = jnp.einsum('gnd,gde->gne', o, projw_ref[...],
                    preferred_element_type=jnp.float32)            # (G, N, D)
    attn = op.reshape(B, HEADS, N, D).sum(axis=1).reshape(T, D) + bproj
    x = x + attn                                      # residual 1 (drop_path = id)

    # ---------------- LayerNorm 2 ----------------
    mu2 = jnp.mean(x, axis=-1, keepdims=True)
    xc2 = x - mu2
    var2 = jnp.mean(xc2 * xc2, axis=-1, keepdims=True)
    h2 = xc2 * jax.lax.rsqrt(var2 + EPS) * g2 + b2

    # ---------------- MLP (fc1 -> GELU -> fc2), use_glu=False ----------------
    w1 = mlpw_ref[0:D, 0:HID]                         # (D, HID)
    w2 = mlpw_ref[:, HID:HID + D]                     # (HID, D)
    z = jnp.dot(h2, w1, preferred_element_type=jnp.float32) + bfc1
    z = jax.nn.gelu(z, approximate=True)              # tanh form -> EUP slot
    z = jnp.dot(z, w2, preferred_element_type=jnp.float32) + bfc2
    o_ref[...] = x + z                                # residual 2


def pack_params(params):
    """Pack the 12 canonical parameter arrays into 4 kernel slabs (wrapper-side)."""
    (g1, b1, wqkv, bqkv, wproj, bproj, g2, b2, w1, bfc1, w2, bfc2) = params

    # --- grouped qkv weights: (G, D+1, 3*DH); last row is the bias -----------
    wq = wqkv[:, 0:D].reshape(D, HEADS, DH)
    wk = wqkv[:, D:2 * D].reshape(D, HEADS, DH)
    wv = wqkv[:, 2 * D:3 * D].reshape(D, HEADS, DH)
    w_h = jnp.transpose(jnp.concatenate([wq, wk, wv], axis=-1), (1, 0, 2))  # (H, D, 3DH)
    bq = bqkv[0, 0:D].reshape(HEADS, DH)
    bk = bqkv[0, D:2 * D].reshape(HEADS, DH)
    bv = bqkv[0, 2 * D:3 * D].reshape(HEADS, DH)
    b_h = jnp.concatenate([bq, bk, bv], axis=-1)[:, None, :]                # (H, 1, 3DH)
    qkvw_g = jnp.tile(jnp.concatenate([w_h, b_h], axis=1), (B, 1, 1))       # (G, D+1, 3DH)

    # --- per-head projection weights: (G, DH, D) ------------------------------
    projw_g = jnp.tile(wproj.reshape(HEADS, DH, D), (B, 1, 1))

    # --- MLP weight slab: (HID, HID + D) --------------------------------------
    mlpw = jnp.zeros((HID, HID + D), jnp.float32)
    mlpw = mlpw.at[0:D, 0:HID].set(w1).at[:, HID:HID + D].set(w2)

    # --- vector/bias slab: one clean (8, 128) tile ----------------------------
    vecs = jnp.zeros((8, 128), jnp.float32)
    vecs = vecs.at[0, 0:D].set(g1[0]).at[1, 0:D].set(b1[0])
    vecs = vecs.at[2, 0:D].set(bproj[0])
    vecs = vecs.at[3, 0:D].set(g2[0]).at[4, 0:D].set(b2[0])
    vecs = vecs.at[5, 0:HID].set(bfc1[0]).at[6, 0:D].set(bfc2[0])
    return qkvw_g, projw_g, mlpw, vecs


def _full_spec(a):
    nd = a.ndim
    return pl.BlockSpec(a.shape, lambda i: (0,) * nd)


def block_forward(x, params):
    qkvw_g, projw_g, mlpw, vecs = pack_params(params)
    x_flat = x.reshape(T, D)   # contiguous reinterpretation, free in the wrapper

    flops = 2 * (T * D * 3 * D              # qkv projection
                 + 2 * G * N * N * DH       # scores + attn*V
                 + G * N * DH * D           # output projection
                 + 2 * T * D * HID)         # fc1 + fc2
    transcendentals = G * N * N + T * HID   # softmax exp + gelu tanh
    bytes_accessed = 4 * (2 * T * D + qkvw_g.size + projw_g.size + mlpw.size + vecs.size)

    out = pl.pallas_call(
        block_kernel,
        out_shape=jax.ShapeDtypeStruct((T, D), jnp.float32),
        grid=(1,),
        in_specs=[_full_spec(x_flat), _full_spec(qkvw_g), _full_spec(projw_g),
                  _full_spec(mlpw), _full_spec(vecs)],
        out_specs=pl.BlockSpec((T, D), lambda i: (0, 0)),
        compiler_params=pltpu.CompilerParams(dimension_semantics=("arbitrary",)),
        cost_estimate=pl.CostEstimate(flops=flops,
                                      transcendentals=transcendentals,
                                      bytes_accessed=bytes_accessed),
    )(x_flat, qkvw_g, projw_g, mlpw, vecs)
    return out.reshape(B, N, D)


def reference_forward(x, params):
    (g1, b1, wqkv, bqkv, wproj, bproj, g2, b2, w1, bfc1, w2, bfc2) = params

    def ln(t, g, bb):
        mu = jnp.mean(t, -1, keepdims=True)
        var = jnp.mean((t - mu) ** 2, -1, keepdims=True)
        return (t - mu) / jnp.sqrt(var + EPS) * g[0] + bb[0]

    h = ln(x, g1, b1)
    qkv = h @ wqkv + bqkv[0]
    q, k, v = jnp.split(qkv, 3, axis=-1)
    q = q.reshape(B, N, HEADS, DH).transpose(0, 2, 1, 3)
    k = k.reshape(B, N, HEADS, DH).transpose(0, 2, 1, 3)
    v = v.reshape(B, N, HEADS, DH).transpose(0, 2, 1, 3)
    a = jax.nn.softmax(jnp.einsum("bhqd,bhkd->bhqk", q, k) * SCALE, axis=-1)
    o = jnp.einsum("bhqk,bhkd->bhqd", a, v).transpose(0, 2, 1, 3).reshape(B, N, D)
    x = x + (o @ wproj + bproj[0])
    h2 = ln(x, g2, b2)
    z = jax.nn.gelu(h2 @ w1 + bfc1[0], approximate=False) @ w2 + bfc2[0]
    return x + z


def init_params(key):
    ks = jax.random.split(key, 6)
    s = 0.02
    g1 = jnp.ones((1, D), jnp.float32)
    b1 = jnp.zeros((1, D), jnp.float32)
    wqkv = s * jax.random.normal(ks[0], (D, 3 * D), jnp.float32)
    bqkv = jnp.zeros((1, 3 * D), jnp.float32)
    wproj = s * jax.random.normal(ks[1], (D, D), jnp.float32)
    bproj = jnp.zeros((1, D), jnp.float32)
    g2 = jnp.ones((1, D), jnp.float32)
    b2 = jnp.zeros((1, D), jnp.float32)
    w1 = s * jax.random.normal(ks[2], (D, HID), jnp.float32)
    bfc1 = jnp.zeros((1, HID), jnp.float32)
    w2 = s * jax.random.normal(ks[3], (HID, D), jnp.float32)
    bfc2 = jnp.zeros((1, D), jnp.float32)
    return (g1, b1, wqkv, bqkv, wproj, bproj, g2, b2, w1, bfc1, w2, bfc2)


if __name__ == "__main__":
    key = jax.random.PRNGKey(0)
    kx, kp = jax.random.split(key)
    x = jax.random.normal(kx, (B, N, D), jnp.float32)
    params = init_params(kp)

    out = block_forward(x, params)
    out = jax.block_until_ready(out)

    ref = reference_forward(x, params)
    assert out.shape == (B, N, D)
    max_err = float(jnp.max(jnp.abs(out - ref)))
    assert jnp.allclose(out, ref, rtol=1e-2, atol=1e-2), f"mismatch vs reference (max abs err {max_err})"
    print("KERNEL_OK")
</pallas_src>

<mosaic_0001>
module attributes {stable_mosaic.version = 11 : i64} {
  func.func @block_kernel(%arg0: i32, %arg1: memref<16x32xf32, #tpu.memory_space<vmem>>, %arg2: memref<8x33x24xf32, #tpu.memory_space<vmem>>, %arg3: memref<8x8x32xf32, #tpu.memory_space<vmem>>, %arg4: memref<128x160xf32, #tpu.memory_space<vmem>>, %arg5: memref<8x128xf32, #tpu.memory_space<vmem>>, %arg6: memref<16x32xf32, #tpu.memory_space<vmem>>) attributes {dimension_semantics = [#tpu.dimension_semantics<arbitrary>], iteration_bounds = array<i64: 1>, scalar_prefetch = 0 : i64, scratch_operands = 0 : i64, tpu.core_type = #tpu.core_type<tc>, window_params = [{pipeline_mode = #tpu.pipeline_mode<synchronous>, transform_indices = @transform_0, window_bounds = array<i64: 16, 32>}, {pipeline_mode = #tpu.pipeline_mode<synchronous>, transform_indices = @transform_1, window_bounds = array<i64: 8, 33, 24>}, {pipeline_mode = #tpu.pipeline_mode<synchronous>, transform_indices = @transform_2, window_bounds = array<i64: 8, 8, 32>}, {pipeline_mode = #tpu.pipeline_mode<synchronous>, transform_indices = @transform_3, window_bounds = array<i64: 128, 160>}, {pipeline_mode = #tpu.pipeline_mode<synchronous>, transform_indices = @transform_4, window_bounds = array<i64: 8, 128>}, {pipeline_mode = #tpu.pipeline_mode<synchronous>, transform_indices = @transform_5, window_bounds = array<i64: 16, 32>}]} {
    %c0 = arith.constant 0 : index
    %c0_0 = arith.constant 0 : index
    %0 = vector.load %arg1[%c0, %c0_0] : memref<16x32xf32, #tpu.memory_space<vmem>>, vector<16x32xf32>
    %c0_1 = arith.constant 0 : index
    %c0_2 = arith.constant 0 : index
    %1 = vector.load %arg5[%c0_1, %c0_2] : memref<8x128xf32, #tpu.memory_space<vmem>>, vector<8x128xf32>
    %2 = vector.extract_strided_slice %1 {offsets = [0, 0], sizes = [1, 32], strides = [1, 1]} : vector<8x128xf32> to vector<1x32xf32>
    %3 = vector.extract_strided_slice %1 {offsets = [1, 0], sizes = [1, 32], strides = [1, 1]} : vector<8x128xf32> to vector<1x32xf32>
    %4 = vector.extract_strided_slice %1 {offsets = [2, 0], sizes = [1, 32], strides = [1, 1]} : vector<8x128xf32> to vector<1x32xf32>
    %5 = vector.extract_strided_slice %1 {offsets = [3, 0], sizes = [1, 32], strides = [1, 1]} : vector<8x128xf32> to vector<1x32xf32>
    %6 = vector.extract_strided_slice %1 {offsets = [4, 0], sizes = [1, 32], strides = [1, 1]} : vector<8x128xf32> to vector<1x32xf32>
    %7 = vector.extract_strided_slice %1 {offsets = [5, 0], sizes = [1, 128], strides = [1, 1]} : vector<8x128xf32> to vector<1x128xf32>
    %8 = vector.extract_strided_slice %1 {offsets = [6, 0], sizes = [1, 32], strides = [1, 1]} : vector<8x128xf32> to vector<1x32xf32>
    %cst = arith.constant dense<0.000000e+00> : vector<16xf32>
    %9 = vector.multi_reduction <add>, %0, %cst [1] : vector<16x32xf32> to vector<16xf32>
    %10 = vector.shape_cast %9 : vector<16xf32> to vector<16x1xf32>
    %cst_3 = arith.constant 3.200000e+01 : f32
    %11 = vector.broadcast %cst_3 : f32 to vector<16x1xf32>
    %12 = arith.divf %10, %11 : vector<16x1xf32>
    %13 = vector.broadcast %12 : vector<16x1xf32> to vector<16x32xf32>
    %14 = arith.subf %0, %13 : vector<16x32xf32>
    %15 = arith.mulf %14, %14 : vector<16x32xf32>
    %cst_4 = arith.constant dense<0.000000e+00> : vector<16xf32>
    %16 = vector.multi_reduction <add>, %15, %cst_4 [1] : vector<16x32xf32> to vector<16xf32>
    %17 = vector.shape_cast %16 : vector<16xf32> to vector<16x1xf32>
    %cst_5 = arith.constant 3.200000e+01 : f32
    %18 = vector.broadcast %cst_5 : f32 to vector<16x1xf32>
    %19 = arith.divf %17, %18 : vector<16x1xf32>
    %cst_6 = arith.constant 9.99999974E-6 : f32
    %20 = vector.broadcast %cst_6 : f32 to vector<16x1xf32>
    %21 = arith.addf %19, %20 : vector<16x1xf32>
    %22 = math.rsqrt %21 : vector<16x1xf32>
    %23 = vector.broadcast %22 : vector<16x1xf32> to vector<16x32xf32>
    %24 = arith.mulf %14, %23 : vector<16x32xf32>
    %25 = vector.broadcast %2 : vector<1x32xf32> to vector<16x32xf32>
    %26 = arith.mulf %24, %25 : vector<16x32xf32>
    %27 = vector.broadcast %3 : vector<1x32xf32> to vector<16x32xf32>
    %28 = arith.addf %26, %27 : vector<16x32xf32>
    %29 = vector.shape_cast %28 : vector<16x32xf32> to vector<2x1x8x32xf32>
    %30 = vector.shape_cast %29 : vector<2x1x8x32xf32> to vector<2x1x8x32xf32>
    %31 = vector.broadcast %30 : vector<2x1x8x32xf32> to vector<2x4x8x32xf32>
    %32 = vector.shape_cast %31 : vector<2x4x8x32xf32> to vector<8x8x32xf32>
    %c0_7 = arith.constant 0 : index
    %c0_8 = arith.constant 0 : index
    %c0_9 = arith.constant 0 : index
    %33 = vector.load %arg2[%c0_7, %c0_8, %c0_9] : memref<8x33x24xf32, #tpu.memory_space<vmem>>, vector<8x33x24xf32>
    %34 = vector.extract_strided_slice %33 {offsets = [0, 0, 0], sizes = [8, 32, 24], strides = [1, 1, 1]} : vector<8x33x24xf32> to vector<8x32x24xf32>
    "tpu.trace_start"() <{level = 10 : i32, message = "gnd,gde->gne"}> : () -> ()
    %cst_10 = arith.constant dense<0.000000e+00> : vector<8x8x24xf32>
    %35 = tpu.matmul %32, %34, %cst_10 {dimension_numbers = #tpu.dot_dimension_numbers<[2], [1], [1], [2], [0, 0, 0, 1, 1, 2], [0], [0]>} : vector<8x8x32xf32>, vector<8x32x24xf32>, vector<8x8x24xf32> -> vector<8x8x24xf32>
    "tpu.trace_stop"() : () -> ()
    %36 = vector.extract_strided_slice %33 {offsets = [0, 32, 0], sizes = [8, 1, 24], strides = [1, 1, 1]} : vector<8x33x24xf32> to vector<8x1x24xf32>
    %37 = vector.broadcast %36 : vector<8x1x24xf32> to vector<8x8x24xf32>
    %38 = arith.addf %35, %37 : vector<8x8x24xf32>
    %39 = vector.extract_strided_slice %38 {offsets = [0, 0, 0], sizes = [8, 8, 8], strides = [1, 1, 1]} : vector<8x8x24xf32> to vector<8x8x8xf32>
    %40 = vector.extract_strided_slice %38 {offsets = [0, 0, 8], sizes = [8, 8, 8], strides = [1, 1, 1]} : vector<8x8x24xf32> to vector<8x8x8xf32>
    %41 = vector.extract_strided_slice %38 {offsets = [0, 0, 16], sizes = [8, 8, 8], strides = [1, 1, 1]} : vector<8x8x24xf32> to vector<8x8x8xf32>
    "tpu.trace_start"() <{level = 10 : i32, message = "gqd,gkd->gqk"}> : () -> ()
    %cst_11 = arith.constant dense<0.000000e+00> : vector<8x8x8xf32>
    %42 = tpu.matmul %39, %40, %cst_11 {dimension_numbers = #tpu.dot_dimension_numbers<[2], [2], [1], [1], [0, 0, 0, 1, 1, 1], [0], [0]>} : vector<8x8x8xf32>, vector<8x8x8xf32>, vector<8x8x8xf32> -> vector<8x8x8xf32>
    "tpu.trace_stop"() : () -> ()
    %cst_12 = arith.constant 0.353553385 : f32
    %43 = vector.broadcast %cst_12 : f32 to vector<8x8x8xf32>
    %44 = arith.mulf %42, %43 : vector<8x8x8xf32>
    %cst_13 = arith.constant dense<0xFF800000> : vector<8x8xf32>
    %45 = vector.multi_reduction <maximumf>, %44, %cst_13 [2] : vector<8x8x8xf32> to vector<8x8xf32>
    %46 = vector.shape_cast %45 : vector<8x8xf32> to vector<8x8x1xf32>
    %47 = vector.broadcast %46 : vector<8x8x1xf32> to vector<8x8x8xf32>
    %48 = arith.subf %44, %47 : vector<8x8x8xf32>
    %49 = math.exp %48 : vector<8x8x8xf32>
    %cst_14 = arith.constant dense<0.000000e+00> : vector<8x8xf32>
    %50 = vector.multi_reduction <add>, %49, %cst_14 [2] : vector<8x8x8xf32> to vector<8x8xf32>
    %51 = vector.shape_cast %50 : vector<8x8xf32> to vector<8x8x1xf32>
    %52 = tpu.reciprocal %51 {approx = true} : vector<8x8x1xf32> -> vector<8x8x1xf32>
    %53 = vector.broadcast %52 : vector<8x8x1xf32> to vector<8x8x8xf32>
    %54 = arith.mulf %49, %53 : vector<8x8x8xf32>
    "tpu.trace_start"() <{level = 10 : i32, message = "gqk,gkd->gqd"}> : () -> ()
    %cst_15 = arith.constant dense<0.000000e+00> : vector<8x8x8xf32>
    %55 = tpu.matmul %54, %41, %cst_15 {dimension_numbers = #tpu.dot_dimension_numbers<[2], [1], [1], [2], [0, 0, 0, 1, 1, 2], [0], [0]>} : vector<8x8x8xf32>, vector<8x8x8xf32>, vector<8x8x8xf32> -> vector<8x8x8xf32>
    "tpu.trace_stop"() : () -> ()
    %c0_16 = arith.constant 0 : index
    %c0_17 = arith.constant 0 : index
    %c0_18 = arith.constant 0 : index
    %56 = vector.load %arg3[%c0_16, %c0_17, %c0_18] : memref<8x8x32xf32, #tpu.memory_space<vmem>>, vector<8x8x32xf32>
    "tpu.trace_start"() <{level = 10 : i32, message = "gnd,gde->gne"}> : () -> ()
    %cst_19 = arith.constant dense<0.000000e+00> : vector<8x8x32xf32>
    %57 = tpu.matmul %55, %56, %cst_19 {dimension_numbers = #tpu.dot_dimension_numbers<[2], [1], [1], [2], [0, 0, 0, 1, 1, 2], [0], [0]>} : vector<8x8x8xf32>, vector<8x8x32xf32>, vector<8x8x32xf32> -> vector<8x8x32xf32>
    "tpu.trace_stop"() : () -> ()
    %58 = vector.shape_cast %57 : vector<8x8x32xf32> to vector<2x4x8x32xf32>
    %cst_20 = arith.constant dense<0.000000e+00> : vector<2x8x32xf32>
    %59 = vector.multi_reduction <add>, %58, %cst_20 [1] : vector<2x4x8x32xf32> to vector<2x8x32xf32>
    %60 = vector.shape_cast %59 : vector<2x8x32xf32> to vector<16x32xf32>
    %61 = vector.broadcast %4 : vector<1x32xf32> to vector<16x32xf32>
    %62 = arith.addf %60, %61 : vector<16x32xf32>
    %63 = arith.addf %0, %62 : vector<16x32xf32>
    %cst_21 = arith.constant dense<0.000000e+00> : vector<16xf32>
    %64 = vector.multi_reduction <add>, %63, %cst_21 [1] : vector<16x32xf32> to vector<16xf32>
    %65 = vector.shape_cast %64 : vector<16xf32> to vector<16x1xf32>
    %cst_22 = arith.constant 3.200000e+01 : f32
    %66 = vector.broadcast %cst_22 : f32 to vector<16x1xf32>
    %67 = arith.divf %65, %66 : vector<16x1xf32>
    %68 = vector.broadcast %67 : vector<16x1xf32> to vector<16x32xf32>
    %69 = arith.subf %63, %68 : vector<16x32xf32>
    %70 = arith.mulf %69, %69 : vector<16x32xf32>
    %cst_23 = arith.constant dense<0.000000e+00> : vector<16xf32>
    %71 = vector.multi_reduction <add>, %70, %cst_23 [1] : vector<16x32xf32> to vector<16xf32>
    %72 = vector.shape_cast %71 : vector<16xf32> to vector<16x1xf32>
    %cst_24 = arith.constant 3.200000e+01 : f32
    %73 = vector.broadcast %cst_24 : f32 to vector<16x1xf32>
    %74 = arith.divf %72, %73 : vector<16x1xf32>
    %cst_25 = arith.constant 9.99999974E-6 : f32
    %75 = vector.broadcast %cst_25 : f32 to vector<16x1xf32>
    %76 = arith.addf %74, %75 : vector<16x1xf32>
    %77 = math.rsqrt %76 : vector<16x1xf32>
    %78 = vector.broadcast %77 : vector<16x1xf32> to vector<16x32xf32>
    %79 = arith.mulf %69, %78 : vector<16x32xf32>
    %80 = vector.broadcast %5 : vector<1x32xf32> to vector<16x32xf32>
    %81 = arith.mulf %79, %80 : vector<16x32xf32>
    %82 = vector.broadcast %6 : vector<1x32xf32> to vector<16x32xf32>
    %83 = arith.addf %81, %82 : vector<16x32xf32>
    %c0_26 = arith.constant 0 : index
    %c0_27 = arith.constant 0 : index
    %84 = vector.load %arg4[%c0_26, %c0_27] : memref<128x160xf32, #tpu.memory_space<vmem>>, vector<32x128xf32>
    %c0_28 = arith.constant 0 : index
    %c128 = arith.constant 128 : index
    %85 = vector.load %arg4[%c0_28, %c128] : memref<128x160xf32, #tpu.memory_space<vmem>>, vector<128x32xf32>
    %cst_29 = arith.constant dense<0.000000e+00> : vector<16x128xf32>
    %86 = tpu.matmul %83, %84, %cst_29 {dimension_numbers = #tpu.dot_dimension_numbers<[1], [0], [0], [1], [0, 0, 1, 1], [], []>} : vector<16x32xf32>, vector<32x128xf32>, vector<16x128xf32> -> vector<16x128xf32>
    %87 = vector.broadcast %7 : vector<1x128xf32> to vector<16x128xf32>
    %88 = arith.addf %86, %87 : vector<16x128xf32>
    %89 = arith.mulf %88, %88 : vector<16x128xf32>
    %90 = arith.mulf %88, %89 : vector<16x128xf32>
    %cst_30 = arith.constant 4.471500e-02 : f32
    %91 = vector.broadcast %cst_30 : f32 to vector<16x128xf32>
    %92 = arith.mulf %91, %90 : vector<16x128xf32>
    %93 = arith.addf %88, %92 : vector<16x128xf32>
    %cst_31 = arith.constant 0.797884583 : f32
    %94 = vector.broadcast %cst_31 : f32 to vector<16x128xf32>
    %95 = arith.mulf %94, %93 : vector<16x128xf32>
    %96 = math.tanh %95 : vector<16x128xf32>
    %cst_32 = arith.constant 1.000000e+00 : f32
    %97 = vector.broadcast %cst_32 : f32 to vector<16x128xf32>
    %98 = arith.addf %97, %96 : vector<16x128xf32>
    %cst_33 = arith.constant 5.000000e-01 : f32
    %99 = vector.broadcast %cst_33 : f32 to vector<16x128xf32>
    %100 = arith.mulf %99, %98 : vector<16x128xf32>
    %101 = arith.mulf %88, %100 : vector<16x128xf32>
    %cst_34 = arith.constant dense<0.000000e+00> : vector<16x32xf32>
    %102 = tpu.matmul %101, %85, %cst_34 {dimension_numbers = #tpu.dot_dimension_numbers<[1], [0], [0], [1], [0, 0, 1, 1], [], []>} : vector<16x128xf32>, vector<128x32xf32>, vector<16x32xf32> -> vector<16x32xf32>
    %103 = vector.broadcast %8 : vector<1x32xf32> to vector<16x32xf32>
    %104 = arith.addf %102, %103 : vector<16x32xf32>
    %105 = arith.addf %63, %104 : vector<16x32xf32>
    %c0_35 = arith.constant 0 : index
    %c0_36 = arith.constant 0 : index
    %106 = vector.load %arg6[%c0_35, %c0_36] : memref<16x32xf32, #tpu.memory_space<vmem>>, vector<16x32xf32>
    tpu.vector_store %arg6[%c0_35, %c0_36], %105 {strides = array<i32>} : memref<16x32xf32, #tpu.memory_space<vmem>>, vector<16x32xf32>,
    return
  }
  func.func @transform_0(%arg0: i32) -> (i32, i32) {
    %c0_i32 = arith.constant 0 : i32
    %c0_i32_0 = arith.constant 0 : i32
    %c0_i32_1 = arith.constant 0 : i32
    return %c0_i32, %c0_i32_0 : i32, i32
  }
  func.func @transform_1(%arg0: i32) -> (i32, i32, i32) {
    %c0_i32 = arith.constant 0 : i32
    %c0_i32_0 = arith.constant 0 : i32
    %c0_i32_1 = arith.constant 0 : i32
    %c0_i32_2 = arith.constant 0 : i32
    return %c0_i32, %c0_i32_0, %c0_i32_1 : i32, i32, i32
  }
  func.func @transform_2(%arg0: i32) -> (i32, i32, i32) {
    %c0_i32 = arith.constant 0 : i32
    %c0_i32_0 = arith.constant 0 : i32
    %c0_i32_1 = arith.constant 0 : i32
    %c0_i32_2 = arith.constant 0 : i32
    return %c0_i32, %c0_i32_0, %c0_i32_1 : i32, i32, i32
  }
  func.func @transform_3(%arg0: i32) -> (i32, i32) {
    %c0_i32 = arith.constant 0 : i32
    %c0_i32_0 = arith.constant 0 : i32
    %c0_i32_1 = arith.constant 0 : i32
    return %c0_i32, %c0_i32_0 : i32, i32
  }
  func.func @transform_4(%arg0: i32) -> (i32, i32) {
    %c0_i32 = arith.constant 0 : i32
    %c0_i32_0 = arith.constant 0 : i32
    %c0_i32_1 = arith.constant 0 : i32
    return %c0_i32, %c0_i32_0 : i32, i32
  }
  func.func @transform_5(%arg0: i32) -> (i32, i32) {
    %c0_i32 = arith.constant 0 : i32
    %c0_i32_0 = arith.constant 0 : i32
    %c0_i32_1 = arith.constant 0 : i32
    return %c0_i32, %c0_i32_0 : i32, i32
  }
}

</mosaic_0001>

<llo_original>
// kernel: tpu_custom_call.1
$region0: #{tpu_custom_call.1}
  #allocation0 [shape = 'u32[]', space=smem, size = 0x4, offset = 0x4, fixed_abs, tag = 'smem constant byte address 0x4 - core index']
  #allocation1 [shape = 'u32[72,128]{1,0:T(1,128)}', space=vmem, size = 0x9000, scoped, tag = 'internal scratch']
  %s0 = inlined_call_operand.vmem [shape: f32[16,32], index: 0, kind: input, shape index: {}]
  %s1 = inlined_call_operand.vmem [shape: f32[8,33,24], index: 1, kind: input, shape index: {}]
  %s2 = inlined_call_operand.vmem [shape: f32[8,8,32], index: 2, kind: input, shape index: {}]
  %s3 = inlined_call_operand.vmem [shape: f32[128,160], index: 3, kind: input, shape index: {}]
  %s4 = inlined_call_operand.vmem [shape: f32[8,128], index: 4, kind: input, shape index: {}]
  %s5 = inlined_call_operand.hbm [shape: f32[16,32], index: 5, kind: output, shape index: {}]
  %s6 = sld [smem:[#allocation0]]
  $region30: #{tpu_custom_call.1} parent=0
    _
  %s8 = ssub.s32 1, %s6
  %s9 = scalar_select 0, %s8, %s6
  $region1: #{tpu_custom_call.1} parent=0
    #allocation2 [shape = 'u8[8192]{0}', space=vmem, size = 0x2000, scoped, tag = 'output window, operand 0, single buffered']
    #allocation3 [shape = 's32[1]{0}', space=sflag, size = 0x4, scoped, tag = 'scoped memory for tpu_custom_call.1']
    %10 = vsyncpa [#allocation3], 0
    // Predicated region
    $region2: #{tpu_custom_call.1} parent=1 // pred_check
      _
    $region3: #{tpu_custom_call.1} parent=1 // pred_check_branch
      %12 = sbr.rel (0) target = $region5
    $region4: #{tpu_custom_call.1} parent=1 // pred_region
      _
    $region5: #{tpu_custom_call.1} parent=1 // pred_fallthru
      _
    // Predicated region
    $region6: #{tpu_custom_call.1} parent=1 // pred_check
      _
    $region7: #{tpu_custom_call.1} parent=1 // pred_check_branch
      %14 = sbr.rel (0) target = $region9
    $region8: #{tpu_custom_call.1} parent=1 // pred_region
      _
    $region9: #{tpu_custom_call.1} parent=1 // pred_fallthru
      _
    // Predicated region
    $region10: #{tpu_custom_call.1} parent=1 // pred_check
      _
    $region11: #{tpu_custom_call.1} parent=1 // pred_check_branch
      %16 = sbr.rel (0) target = $region13
    $region12: #{tpu_custom_call.1} parent=1 // pred_region
      _
    $region13: #{tpu_custom_call.1} parent=1 // pred_fallthru
      _
    // Predicated region
    $region14: #{tpu_custom_call.1} parent=1 // pred_check
      _
    $region15: #{tpu_custom_call.1} parent=1 // pred_check_branch
      %18 = sbr.rel (0) target = $region17
    $region16: #{tpu_custom_call.1} parent=1 // pred_region
      _
    $region17: #{tpu_custom_call.1} parent=1 // pred_fallthru
      _
    // Predicated region
    $region18: #{tpu_custom_call.1} parent=1 // pred_check
      _
    $region19: #{tpu_custom_call.1} parent=1 // pred_check_branch
      %20 = sbr.rel (0) target = $region21
    $region20: #{tpu_custom_call.1} parent=1 // pred_region
      _
    $region21: #{tpu_custom_call.1} parent=1 // pred_fallthru
      _
    %v21 = vld [vmem:[%s0] sm:$0xff]
    %v22 = vld [vmem:[%s0 + $0x8] sm:$0xff]
    %v23 = vld [vmem:[%s4] sm:$0xff]
    %vm24 = vcmask 261120
    %v25 = vsel %vm24, %v21, 0.0
    %26 = vadd.xlane.f32.xlu0 %v25
    %v27 = vpop.xlane.xlu0 %26
    %v28 = vsel %vm24, %v22, 0.0
    %29 = vadd.xlane.f32.xlu0 %v28
    %v30 = vpop.xlane.xlu0 %29
    %v31 = vrcp.pop 32.0
    %v32 = vmul.f32 32.0, %v31
    %v33 = vsub.f32 1.0, %v32
    %v34 = vmul.f32 %v31, %v33
    %v35 = vadd.f32 %v31, %v34
    %vm36 = vweird.f32 %v31
    %v37 = vsel %vm36, %v31, %v35
    %v38 = vmul.f32 %v27, %v37
    %v39 = vmul.f32 %v30, %v37
    %v40 = vsub.f32 %v21, %v38
    %v41 = vsub.f32 %v22, %v39
    %v42 = vmul.f32 %v40, %v40
    %v43 = vmul.f32 %v41, %v41
    %v44 = vsel %vm24, %v42, 0.0
    %45 = vadd.xlane.f32.xlu0 %v44
    %v46 = vpop.xlane.xlu0 %45
    %v47 = vsel %vm24, %v43, 0.0
    %48 = vadd.xlane.f32.xlu0 %v47
    %v49 = vpop.xlane.xlu0 %48
    %v50 = vmul.f32 %v46, %v37
    %v51 = vmul.f32 %v49, %v37
    %v52 = vadd.f32 %v50, 1e-05
    %v53 = vadd.f32 %v51, 1e-05
    %v54 = vrsqrt.pop %v52
    %v55 = vmul.f32 %v54, %v52
    %v56 = vmul.f32 %v55, %v54
    %v57 = vmul.f32 0.5, %v56
    %v58 = vsub.f32 1.5, %v57
    %v59 = vmul.f32 %v54, %v58
    %vm60 = vweird.f32 %v52
    %vm61 = vweird.f32 %v54
    %vm62 = vmor %vm60, %vm61
    %v63 = vsel %vm62, %v54, %v59
    %v64 = vrsqrt.pop %v53
    %v65 = vmul.f32 %v64, %v53
    %v66 = vmul.f32 %v65, %v64
    %v67 = vmul.f32 0.5, %v66
    %v68 = vsub.f32 1.5, %v67
    %v69 = vmul.f32 %v64, %v68
    %vm70 = vweird.f32 %v53
    %vm71 = vweird.f32 %v64
    %vm72 = vmor %vm70, %vm71
    %v73 = vsel %vm72, %v64, %v69
    %v74 = vmul.f32 %v40, %v63
    %v75 = vmul.f32 %v41, %v73
    %v76 = vperm.slane %v23, 0
    %v77 = vmul.f32 %v74, %v76
    %v78 = vmul.f32 %v75, %v76
    %v79 = vperm.slane %v23, 1
    %v80 = vadd.f32 %v77, %v79
    %v81 = vadd.f32 %v78, %v79
    %v82 = vld [vmem:[%s1] sm:$0xff]
    %v83 = vld [vmem:[%s1 + $0x8] sm:$0xff]
    %v84 = vld [vmem:[%s1 + $0x10] sm:$0xff]
    %v85 = vld [vmem:[%s1 + $0x18] sm:$0xff]
    %v86 = vld [vmem:[%s1 + $0x20] sm:$0x1]
    %v87 = vld [vmem:[%s1 + $0x28] sm:$0xff]
    %v88 = vld [vmem:[%s1 + $0x30] sm:$0xff]
    %v89 = vld [vmem:[%s1 + $0x38] sm:$0xff]
    %v90 = vld [vmem:[%s1 + $0x40] sm:$0xff]
    %v91 = vld [vmem:[%s1 + $0x48] sm:$0x1]
    %v92 = vld [vmem:[%s1 + $0x50] sm:$0xff]
    %v93 = vld [vmem:[%s1 + $0x58] sm:$0xff]
    %v94 = vld [vmem:[%s1 + $0x60] sm:$0xff]
    %v95 = vld [vmem:[%s1 + $0x68] sm:$0xff]
    %v96 = vld [vmem:[%s1 + $0x70] sm:$0x1]
    %v97 = vld [vmem:[%s1 + $0x78] sm:$0xff]
    %v98 = vld [vmem:[%s1 + $0x80] sm:$0xff]
    %v99 = vld [vmem:[%s1 + $0x88] sm:$0xff]
    %v100 = vld [vmem:[%s1 + $0x90] sm:$0xff]
    %v101 = vld [vmem:[%s1 + $0x98] sm:$0x1]
    %v102 = vld [vmem:[%s1 + $0xa0] sm:$0xff]
    %v103 = vld [vmem:[%s1 + $0xa8] sm:$0xff]
    %v104 = vld [vmem:[%s1 + $0xb0] sm:$0xff]
    %v105 = vld [vmem:[%s1 + $0xb8] sm:$0xff]
    %v106 = vld [vmem:[%s1 + $0xc0] sm:$0x1]
    %v107 = vld [vmem:[%s1 + $0xc8] sm:$0xff]
    %v108 = vld [vmem:[%s1 + $0xd0] sm:$0xff]
    %v109 = vld [vmem:[%s1 + $0xd8] sm:$0xff]
    %v110 = vld [vmem:[%s1 + $0xe0] sm:$0xff]
    %v111 = vld [vmem:[%s1 + $0xe8] sm:$0x1]
    %v112 = vld [vmem:[%s1 + $0xf0] sm:$0xff]
    %v113 = vld [vmem:[%s1 + $0xf8] sm:$0xff]
    %v114 = vld [vmem:[%s1 + $0x100] sm:$0xff]
    %v115 = vld [vmem:[%s1 + $0x108] sm:$0xff]
    %v116 = vld [vmem:[%s1 + $0x110] sm:$0x1]
    %v117 = vld [vmem:[%s1 + $0x118] sm:$0xff]
    %v118 = vld [vmem:[%s1 + $0x120] sm:$0xff]
    %v119 = vld [vmem:[%s1 + $0x128] sm:$0xff]
    %v120 = vld [vmem:[%s1 + $0x130] sm:$0xff]
    %v121 = vld [vmem:[%s1 + $0x138] sm:$0x1]
    %v122 = vperm.slane %v86, 0
    %v123 = vperm.slane %v91, 0
    %v124 = vperm.slane %v96, 0
    %v125 = vperm.slane %v101, 0
    %v126 = vperm.slane %v106, 0
    %v127 = vperm.slane %v111, 0
    %v128 = vperm.slane %v116, 0
    %v129 = vperm.slane %v121, 0
    %v131 = vsel %vm24, %v80, 0
    %133 = vmatpush.msra.mxu0 0.0
    %134 = vmatpush.msra.mxu0 0.0
    %135 = vmatpush.msra.mxu0 0.0
    %136 = vmatpush.msra.mxu0 0.0
    %137 = vmatpush.msra.mxu0 0.0
    %138 = vmatpush.msra.mxu0 0.0
    %139 = vmatpush.msra.mxu0 0.0
    %140 = vmatpush.msra.mxu0 0.0
    %141 = vmatpush.msra.mxu0 0.0
    %142 = vmatpush.msra.mxu0 0.0
    %143 = vmatpush.msra.mxu0 0.0
    %144 = vmatpush.msra.mxu0 0.0
    %145 = vmatpush.msra.mxu0 %v85
    %146 = vmatpush.msra.mxu0 %v84
    %147 = vmatpush.msra.mxu0 %v83
    %148 = vmatpush.msra.mxu0 %v82
    %149 = vmatmul.f32.gmra.mxu0 %v131
    %v150 = vpop.f32.mrf.mxu0
    %v151 = vadd.f32 %v122, %v150
    %152 = vdwg.mxu0
    %153 = vmatpush.msra.mxu0 0.0
    %154 = vmatpush.msra.mxu0 0.0
    %155 = vmatpush.msra.mxu0 0.0
    %156 = vmatpush.msra.mxu0 0.0
    %157 = vmatpush.msra.mxu0 0.0
    %158 = vmatpush.msra.mxu0 0.0
    %159 = vmatpush.msra.mxu0 0.0
    %160 = vmatpush.msra.mxu0 0.0
    %161 = vmatpush.msra.mxu0 0.0
    %162 = vmatpush.msra.mxu0 0.0
    %163 = vmatpush.msra.mxu0 0.0
    %164 = vmatpush.msra.mxu0 0.0
    %165 = vmatpush.msra.mxu0 %v90
    %166 = vmatpush.msra.mxu0 %v89
    %167 = vmatpush.msra.mxu0 %v88
    %168 = vmatpush.msra.mxu0 %v87
    %169 = vmatmul.f32.gmra.mxu0 %v131
    %v170 = vpop.f32.mrf.mxu0
    %v171 = vadd.f32 %v123, %v170
    %172 = vdwg.mxu0
    %173 = vmatpush.msra.mxu0 0.0
    %174 = vmatpush.msra.mxu0 0.0
    %175 = vmatpush.msra.mxu0 0.0
    %176 = vmatpush.msra.mxu0 0.0
    %177 = vmatpush.msra.mxu0 0.0
    %178 = vmatpush.msra.mxu0 0.0
    %179 = vmatpush.msra.mxu0 0.0
    %180 = vmatpush.msra.mxu0 0.0
    %181 = vmatpush.msra.mxu0 0.0
    %182 = vmatpush.msra.mxu0 0.0
    %183 = vmatpush.msra.mxu0 0.0
    %184 = vmatpush.msra.mxu0 0.0
    %185 = vmatpush.msra.mxu0 %v95
    %186 = vmatpush.msra.mxu0 %v94
    %187 = vmatpush.msra.mxu0 %v93
    %188 = vmatpush.msra.mxu0 %v92
    %189 = vmatmul.f32.gmra.mxu0 %v131
    %v190 = vpop.f32.mrf.mxu0
    %v191 = vadd.f32 %v124, %v190
    %192 = vdwg.mxu0
    %193 = vmatpush.msra.mxu0 0.0
    %194 = vmatpush.msra.mxu0 0.0
    %195 = vmatpush.msra.mxu0 0.0
    %196 = vmatpush.msra.mxu0 0.0
    %197 = vmatpush.msra.mxu0 0.0
    %198 = vmatpush.msra.mxu0 0.0
    %199 = vmatpush.msra.mxu0 0.0
    %200 = vmatpush.msra.mxu0 0.0
    %201 = vmatpush.msra.mxu0 0.0
    %202 = vmatpush.msra.mxu0 0.0
    %203 = vmatpush.msra.mxu0 0.0
    %204 = vmatpush.msra.mxu0 0.0
    %205 = vmatpush.msra.mxu0 %v100
    %206 = vmatpush.msra.mxu0 %v99
    %207 = vmatpush.msra.mxu0 %v98
    %208 = vmatpush.msra.mxu0 %v97
    %209 = vmatmul.f32.gmra.mxu0 %v131
    %v210 = vpop.f32.mrf.mxu0
    %v211 = vadd.f32 %v125, %v210
    %212 = vdwg.mxu0
    %v214 = vsel %vm24, %v81, 0
    %216 = vmatpush.msra.mxu0 0.0
    %217 = vmatpush.msra.mxu0 0.0
    %218 = vmatpush.msra.mxu0 0.0
    %219 = vmatpush.msra.mxu0 0.0
    %220 = vmatpush.msra.mxu0 0.0
    %221 = vmatpush.msra.mxu0 0.0
    %222 = vmatpush.msra.mxu0 0.0
    %223 = vmatpush.msra.mxu0 0.0
    %224 = vmatpush.msra.mxu0 0.0
    %225 = vmatpush.msra.mxu0 0.0
    %226 = vmatpush.msra.mxu0 0.0
    %227 = vmatpush.msra.mxu0 0.0
    %228 = vmatpush.msra.mxu0 %v105
    %229 = vmatpush.msra.mxu0 %v104
    %230 = vmatpush.msra.mxu0 %v103
    %231 = vmatpush.msra.mxu0 %v102
    %232 = vmatmul.f32.gmra.mxu0 %v214
    %v233 = vpop.f32.mrf.mxu0
    %v234 = vadd.f32 %v126, %v233
    %235 = vdwg.mxu0
    %236 = vmatpush.msra.mxu0 0.0
    %237 = vmatpush.msra.mxu0 0.0
    %238 = vmatpush.msra.mxu0 0.0
    %239 = vmatpush.msra.mxu0 0.0
    %240 = vmatpush.msra.mxu0 0.0
    %241 = vmatpush.msra.mxu0 0.0
    %242 = vmatpush.msra.mxu0 0.0
    %243 = vmatpush.msra.mxu0 0.0
    %244 = vmatpush.msra.mxu0 0.0
    %245 = vmatpush.msra.mxu0 0.0
    %246 = vmatpush.msra.mxu0 0.0
    %247 = vmatpush.msra.mxu0 0.0
    %248 = vmatpush.msra.mxu0 %v110
    %249 = vmatpush.msra.mxu0 %v109
    %250 = vmatpush.msra.mxu0 %v108
    %251 = vmatpush.msra.mxu0 %v107
    %252 = vmatmul.f32.gmra.mxu0 %v214
    %v253 = vpop.f32.mrf.mxu0
    %v254 = vadd.f32 %v127, %v253
    %255 = vdwg.mxu0
    %256 = vmatpush.msra.mxu0 0.0
    %257 = vmatpush.msra.mxu0 0.0
    %258 = vmatpush.msra.mxu0 0.0
    %259 = vmatpush.msra.mxu0 0.0
    %260 = vmatpush.msra.mxu0 0.0
    %261 = vmatpush.msra.mxu0 0.0
    %262 = vmatpush.msra.mxu0 0.0
    %263 = vmatpush.msra.mxu0 0.0
    %264 = vmatpush.msra.mxu0 0.0
    %265 = vmatpush.msra.mxu0 0.0
    %266 = vmatpush.msra.mxu0 0.0
    %267 = vmatpush.msra.mxu0 0.0
    %268 = vmatpush.msra.mxu0 %v115
    %269 = vmatpush.msra.mxu0 %v114
    %270 = vmatpush.msra.mxu0 %v113
    %271 = vmatpush.msra.mxu0 %v112
    %272 = vmatmul.f32.gmra.mxu0 %v214
    %v273 = vpop.f32.mrf.mxu0
    %v274 = vadd.f32 %v128, %v273
    %275 = vdwg.mxu0
    %276 = vmatpush.msra.mxu0 0.0
    %277 = vmatpush.msra.mxu0 0.0
    %278 = vmatpush.msra.mxu0 0.0
    %279 = vmatpush.msra.mxu0 0.0
    %280 = vmatpush.msra.mxu0 0.0
    %281 = vmatpush.msra.mxu0 0.0
    %282 = vmatpush.msra.mxu0 0.0
    %283 = vmatpush.msra.mxu0 0.0
    %284 = vmatpush.msra.mxu0 0.0
    %285 = vmatpush.msra.mxu0 0.0
    %286 = vmatpush.msra.mxu0 0.0
    %287 = vmatpush.msra.mxu0 0.0
    %288 = vmatpush.msra.mxu0 %v120
    %289 = vmatpush.msra.mxu0 %v119
    %290 = vmatpush.msra.mxu0 %v118
    %291 = vmatpush.msra.mxu0 %v117
    %292 = vmatmul.f32.gmra.mxu0 %v214
    %v293 = vpop.f32.mrf.mxu0
    %v294 = vadd.f32 %v129, %v293
    %295 = vdwg.mxu0
    %297 = vrot.lane.b32.xlu0 %v151, 120
    %v298 = vpop.permute.xlu0 %297
    %vm299 = vcmask 64512
    %v300 = vsel %vm299, %v151, 0
    %v302 = vsel %vm299, %v298, 0
    %304 = vmatpush.xpose.msra.mxu0 0.0
    %305 = vmatpush.xpose.msra.mxu0 0.0
    %306 = vmatpush.xpose.msra.mxu0 0.0
    %307 = vmatpush.xpose.msra.mxu0 0.0
    %308 = vmatpush.xpose.msra.mxu0 0.0
    %309 = vmatpush.xpose.msra.mxu0 0.0
    %310 = vmatpush.xpose.msra.mxu0 0.0
    %311 = vmatpush.xpose.msra.mxu0 0.0
    %312 = vmatpush.xpose.msra.mxu0 0.0
    %313 = vmatpush.xpose.msra.mxu0 0.0
    %314 = vmatpush.xpose.msra.mxu0 0.0
    %315 = vmatpush.xpose.msra.mxu0 0.0
    %316 = vmatpush.xpose.msra.mxu0 0.0
    %317 = vmatpush.xpose.msra.mxu0 0.0
    %318 = vmatpush.xpose.msra.mxu0 0.0
    %319 = vmatpush.xpose.msra.mxu0 %v302
    %320 = vmatmul.f32.gmra.mxu0 %v300
    %v321 = vpop.f32.mrf.mxu0
    %v322 = vadd.f32 0.0, %v321
    %323 = vdwg.mxu0
    %325 = vrot.lane.b32.xlu0 %v171, 120
    %v326 = vpop.permute.xlu0 %325
    %v327 = vsel %vm299, %v171, 0
    %v329 = vsel %vm299, %v326, 0
    %331 = vmatpush.xpose.msra.mxu0 0.0
    %332 = vmatpush.xpose.msra.mxu0 0.0
    %333 = vmatpush.xpose.msra.mxu0 0.0
    %334 = vmatpush.xpose.msra.mxu0 0.0
    %335 = vmatpush.xpose.msra.mxu0 0.0
    %336 = vmatpush.xpose.msra.mxu0 0.0
    %337 = vmatpush.xpose.msra.mxu0 0.0
    %338 = vmatpush.xpose.msra.mxu0 0.0
    %339 = vmatpush.xpose.msra.mxu0 0.0
    %340 = vmatpush.xpose.msra.mxu0 0.0
    %341 = vmatpush.xpose.msra.mxu0 0.0
    %342 = vmatpush.xpose.msra.mxu0 0.0
    %343 = vmatpush.xpose.msra.mxu0 0.0
    %344 = vmatpush.xpose.msra.mxu0 0.0
    %345 = vmatpush.xpose.msra.mxu0 0.0
    %346 = vmatpush.xpose.msra.mxu0 %v329
    %347 = vmatmul.f32.gmra.mxu0 %v327
    %v348 = vpop.f32.mrf.mxu0
    %v349 = vadd.f32 0.0, %v348
    %350 = vdwg.mxu0
    %352 = vrot.lane.b32.xlu0 %v191, 120
    %v353 = vpop.permute.xlu0 %352
    %v354 = vsel %vm299, %v191, 0
    %v356 = vsel %vm299, %v353, 0
    %358 = vmatpush.xpose.msra.mxu0 0.0
    %359 = vmatpush.xpose.msra.mxu0 0.0
    %360 = vmatpush.xpose.msra.mxu0 0.0
    %361 = vmatpush.xpose.msra.mxu0 0.0
    %362 = vmatpush.xpose.msra.mxu0 0.0
    %363 = vmatpush.xpose.msra.mxu0 0.0
    %364 = vmatpush.xpose.msra.mxu0 0.0
    %365 = vmatpush.xpose.msra.mxu0 0.0
    %366 = vmatpush.xpose.msra.mxu0 0.0
    %367 = vmatpush.xpose.msra.mxu0 0.0
    %368 = vmatpush.xpose.msra.mxu0 0.0
    %369 = vmatpush.xpose.msra.mxu0 0.0
    %370 = vmatpush.xpose.msra.mxu0 0.0
    %371 = vmatpush.xpose.msra.mxu0 0.0
    %372 = vmatpush.xpose.msra.mxu0 0.0
    %373 = vmatpush.xpose.msra.mxu0 %v356
    %374 = vmatmul.f32.gmra.mxu0 %v354
    %v375 = vpop.f32.mrf.mxu0
    %v376 = vadd.f32 0.0, %v375
    %377 = vdwg.mxu0
    %379 = vrot.lane.b32.xlu0 %v211, 120
    %v380 = vpop.permute.xlu0 %379
    %v381 = vsel %vm299, %v211, 0
    %v383 = vsel %vm299, %v380, 0
    %385 = vmatpush.xpose.msra.mxu0 0.0
    %386 = vmatpush.xpose.msra.mxu0 0.0
    %387 = vmatpush.xpose.msra.mxu0 0.0
    %388 = vmatpush.xpose.msra.mxu0 0.0
    %389 = vmatpush.xpose.msra.mxu0 0.0
    %390 = vmatpush.xpose.msra.mxu0 0.0
    %391 = vmatpush.xpose.msra.mxu0 0.0
    %392 = vmatpush.xpose.msra.mxu0 0.0
    %393 = vmatpush.xpose.msra.mxu0 0.0
    %394 = vmatpush.xpose.msra.mxu0 0.0
    %395 = vmatpush.xpose.msra.mxu0 0.0
    %396 = vmatpush.xpose.msra.mxu0 0.0
    %397 = vmatpush.xpose.msra.mxu0 0.0
    %398 = vmatpush.xpose.msra.mxu0 0.0
    %399 = vmatpush.xpose.msra.mxu0 0.0
    %400 = vmatpush.xpose.msra.mxu0 %v383
    %401 = vmatmul.f32.gmra.mxu0 %v381
    %v402 = vpop.f32.mrf.mxu0
    %v403 = vadd.f32 0.0, %v402
    %404 = vdwg.mxu0
    %406 = vrot.lane.b32.xlu0 %v234, 120
    %v407 = vpop.permute.xlu0 %406
    %v408 = vsel %vm299, %v234, 0
    %v410 = vsel %vm299, %v407, 0
    %412 = vmatpush.xpose.msra.mxu0 0.0
    %413 = vmatpush.xpose.msra.mxu0 0.0
    %414 = vmatpush.xpose.msra.mxu0 0.0
    %415 = vmatpush.xpose.msra.mxu0 0.0
    %416 = vmatpush.xpose.msra.mxu0 0.0
    %417 = vmatpush.xpose.msra.mxu0 0.0
    %418 = vmatpush.xpose.msra.mxu0 0.0
    %419 = vmatpush.xpose.msra.mxu0 0.0
    %420 = vmatpush.xpose.msra.mxu0 0.0
    %421 = vmatpush.xpose.msra.mxu0 0.0
    %422 = vmatpush.xpose.msra.mxu0 0.0
    %423 = vmatpush.xpose.msra.mxu0 0.0
    %424 = vmatpush.xpose.msra.mxu0 0.0
    %425 = vmatpush.xpose.msra.mxu0 0.0
    %426 = vmatpush.xpose.msra.mxu0 0.0
    %427 = vmatpush.xpose.msra.mxu0 %v410
    %428 = vmatmul.f32.gmra.mxu0 %v408
    %v429 = vpop.f32.mrf.mxu0
    %v430 = vadd.f32 0.0, %v429
    %431 = vdwg.mxu0
    %433 = vrot.lane.b32.xlu0 %v254, 120
    %v434 = vpop.permute.xlu0 %433
    %v435 = vsel %vm299, %v254, 0
    %v437 = vsel %vm299, %v434, 0
    %439 = vmatpush.xpose.msra.mxu0 0.0
    %440 = vmatpush.xpose.msra.mxu0 0.0
    %441 = vmatpush.xpose.msra.mxu0 0.0
    %442 = vmatpush.xpose.msra.mxu0 0.0
    %443 = vmatpush.xpose.msra.mxu0 0.0
    %444 = vmatpush.xpose.msra.mxu0 0.0
    %445 = vmatpush.xpose.msra.mxu0 0.0
    %446 = vmatpush.xpose.msra.mxu0 0.0
    %447 = vmatpush.xpose.msra.mxu0 0.0
    %448 = vmatpush.xpose.msra.mxu0 0.0
    %449 = vmatpush.xpose.msra.mxu0 0.0
    %450 = vmatpush.xpose.msra.mxu0 0.0
    %451 = vmatpush.xpose.msra.mxu0 0.0
    %452 = vmatpush.xpose.msra.mxu0 0.0
    %453 = vmatpush.xpose.msra.mxu0 0.0
    %454 = vmatpush.xpose.msra.mxu0 %v437
    %455 = vmatmul.f32.gmra.mxu0 %v435
    %v456 = vpop.f32.mrf.mxu0
    %v457 = vadd.f32 0.0, %v456
    %458 = vdwg.mxu0
    %460 = vrot.lane.b32.xlu0 %v274, 120
    %v461 = vpop.permute.xlu0 %460
    %v462 = vsel %vm299, %v274, 0
    %v464 = vsel %vm299, %v461, 0
    %466 = vmatpush.xpose.msra.mxu0 0.0
    %467 = vmatpush.xpose.msra.mxu0 0.0
    %468 = vmatpush.xpose.msra.mxu0 0.0
    %469 = vmatpush.xpose.msra.mxu0 0.0
    %470 = vmatpush.xpose.msra.mxu0 0.0
    %471 = vmatpush.xpose.msra.mxu0 0.0
    %472 = vmatpush.xpose.msra.mxu0 0.0
    %473 = vmatpush.xpose.msra.mxu0 0.0
    %474 = vmatpush.xpose.msra.mxu0 0.0
    %475 = vmatpush.xpose.msra.mxu0 0.0
    %476 = vmatpush.xpose.msra.mxu0 0.0
    %477 = vmatpush.xpose.msra.mxu0 0.0
    %478 = vmatpush.xpose.msra.mxu0 0.0
    %479 = vmatpush.xpose.msra.mxu0 0.0
    %480 = vmatpush.xpose.msra.mxu0 0.0
    %481 = vmatpush.xpose.msra.mxu0 %v464
    %482 = vmatmul.f32.gmra.mxu0 %v462
    %v483 = vpop.f32.mrf.mxu0
    %v484 = vadd.f32 0.0, %v483
    %485 = vdwg.mxu0
    %487 = vrot.lane.b32.xlu0 %v294, 120
    %v488 = vpop.permute.xlu0 %487
    %v489 = vsel %vm299, %v294, 0
    %v491 = vsel %vm299, %v488, 0
    %493 = vmatpush.xpose.msra.mxu0 0.0
    %494 = vmatpush.xpose.msra.mxu0 0.0
    %495 = vmatpush.xpose.msra.mxu0 0.0
    %496 = vmatpush.xpose.msra.mxu0 0.0
    %497 = vmatpush.xpose.msra.mxu0 0.0
    %498 = vmatpush.xpose.msra.mxu0 0.0
    %499 = vmatpush.xpose.msra.mxu0 0.0
    %500 = vmatpush.xpose.msra.mxu0 0.0
    %501 = vmatpush.xpose.msra.mxu0 0.0
    %502 = vmatpush.xpose.msra.mxu0 0.0
    %503 = vmatpush.xpose.msra.mxu0 0.0
    %504 = vmatpush.xpose.msra.mxu0 0.0
    %505 = vmatpush.xpose.msra.mxu0 0.0
    %506 = vmatpush.xpose.msra.mxu0 0.0
    %507 = vmatpush.xpose.msra.mxu0 0.0
    %508 = vmatpush.xpose.msra.mxu0 %v491
    %509 = vmatmul.f32.gmra.mxu0 %v489
    %v510 = vpop.f32.mrf.mxu0
    %v511 = vadd.f32 0.0, %v510
    %512 = vdwg.mxu0
    %v513 = vmul.f32 %v322, 0.35355338
    %v514 = vmul.f32 %v349, 0.35355338
    %v515 = vmul.f32 %v376, 0.35355338
    %v516 = vmul.f32 %v403, 0.35355338
    %v517 = vmul.f32 %v430, 0.35355338
    %v518 = vmul.f32 %v457, 0.35355338
    %v519 = vmul.f32 %v484, 0.35355338
    %v520 = vmul.f32 %v511, 0.35355338
    %v521 = vsel %vm299, %v513, -inf
    %522 = vmax.xlane.f32.xlu0 %v521
    %v523 = vpop.xlane.xlu0 %522
    %v524 = vsel %vm299, %v514, -inf
    %525 = vmax.xlane.f32.xlu0 %v524
    %v526 = vpop.xlane.xlu0 %525
    %v527 = vsel %vm299, %v515, -inf
    %528 = vmax.xlane.f32.xlu0 %v527
    %v529 = vpop.xlane.xlu0 %528
    %v530 = vsel %vm299, %v516, -inf
    %531 = vmax.xlane.f32.xlu0 %v530
    %v532 = vpop.xlane.xlu0 %531
    %v533 = vsel %vm299, %v517, -inf
    %534 = vmax.xlane.f32.xlu0 %v533
    %v535 = vpop.xlane.xlu0 %534
    %v536 = vsel %vm299, %v518, -inf
    %537 = vmax.xlane.f32.xlu0 %v536
    %v538 = vpop.xlane.xlu0 %537
    %v539 = vsel %vm299, %v519, -inf
    %540 = vmax.xlane.f32.xlu0 %v539
    %v541 = vpop.xlane.xlu0 %540
    %v542 = vsel %vm299, %v520, -inf
    %543 = vmax.xlane.f32.xlu0 %v542
    %v544 = vpop.xlane.xlu0 %543
    %v545 = vsub.f32 %v513, %v523
    %v546 = vsub.f32 %v514, %v526
    %v547 = vsub.f32 %v515, %v529
    %v548 = vsub.f32 %v516, %v532
    %v549 = vsub.f32 %v517, %v535
    %v550 = vsub.f32 %v518, %v538
    %v551 = vsub.f32 %v519, %v541
    %v552 = vsub.f32 %v520, %v544
    %v553 = vmul.f32 %v545, 1.442695
    %v554 = vpow.pop %v553
    %v555 = vmul.f32 %v546, 1.442695
    %v556 = vpow.pop %v555
    %v557 = vmul.f32 %v547, 1.442695
    %v558 = vpow.pop %v557
    %v559 = vmul.f32 %v548, 1.442695
    %v560 = vpow.pop %v559
    %v561 = vmul.f32 %v549, 1.442695
    %v562 = vpow.pop %v561
    %v563 = vmul.f32 %v550, 1.442695
    %v564 = vpow.pop %v563
    %v565 = vmul.f32 %v551, 1.442695
    %v566 = vpow.pop %v565
    %v567 = vmul.f32 %v552, 1.442695
    %v568 = vpow.pop %v567
    %v569 = vsel %vm299, %v554, 0.0
    %570 = vadd.xlane.f32.xlu0 %v569
    %v571 = vpop.xlane.xlu0 %570
    %v572 = vsel %vm299, %v556, 0.0
    %573 = vadd.xlane.f32.xlu0 %v572
    %v574 = vpop.xlane.xlu0 %573
    %v575 = vsel %vm299, %v558, 0.0
    %576 = vadd.xlane.f32.xlu0 %v575
    %v577 = vpop.xlane.xlu0 %576
    %v578 = vsel %vm299, %v560, 0.0
    %579 = vadd.xlane.f32.xlu0 %v578
    %v580 = vpop.xlane.xlu0 %579
    %v581 = vsel %vm299, %v562, 0.0
    %582 = vadd.xlane.f32.xlu0 %v581
    %v583 = vpop.xlane.xlu0 %582
    %v584 = vsel %vm299, %v564, 0.0
    %585 = vadd.xlane.f32.xlu0 %v584
    %v586 = vpop.xlane.xlu0 %585
    %v587 = vsel %vm299, %v566, 0.0
    %588 = vadd.xlane.f32.xlu0 %v587
    %v589 = vpop.xlane.xlu0 %588
    %v590 = vsel %vm299, %v568, 0.0
    %591 = vadd.xlane.f32.xlu0 %v590
    %v592 = vpop.xlane.xlu0 %591
    %v593 = vrcp.pop %v571
    %v594 = vrcp.pop %v574
    %v595 = vrcp.pop %v577
    %v596 = vrcp.pop %v580
    %v597 = vrcp.pop %v583
    %v598 = vrcp.pop %v586
    %v599 = vrcp.pop %v589
    %v600 = vrcp.pop %v592
    %v601 = vmul.f32 %v554, %v593
    %v602 = vmul.f32 %v556, %v594
    %v603 = vmul.f32 %v558, %v595
    %v604 = vmul.f32 %v560, %v596
    %v605 = vmul.f32 %v562, %v597
    %v606 = vmul.f32 %v564, %v598
    %v607 = vmul.f32 %v566, %v599
    %v608 = vmul.f32 %v568, %v600
    %609 = vrot.lane.b32.xlu0 %v151, 112
    %v610 = vpop.permute.xlu0 %609
    %v613 = vsel %vm299, %v601, 0
    %615 = vmatpush.msra.mxu0 0.0
    %616 = vmatpush.msra.mxu0 0.0
    %617 = vmatpush.msra.mxu0 0.0
    %618 = vmatpush.msra.mxu0 0.0
    %619 = vmatpush.msra.mxu0 0.0
    %620 = vmatpush.msra.mxu0 0.0
    %621 = vmatpush.msra.mxu0 0.0
    %622 = vmatpush.msra.mxu0 0.0
    %623 = vmatpush.msra.mxu0 0.0
    %624 = vmatpush.msra.mxu0 0.0
    %625 = vmatpush.msra.mxu0 0.0
    %626 = vmatpush.msra.mxu0 0.0
    %627 = vmatpush.msra.mxu0 0.0
    %628 = vmatpush.msra.mxu0 0.0
    %629 = vmatpush.msra.mxu0 0.0
    %630 = vmatpush.msra.mxu0 %v610
    %631 = vmatmul.f32.gmra.mxu0 %v613
    %v632 = vpop.f32.mrf.mxu0
    %v633 = vadd.f32 0.0, %v632
    %634 = vdwg.mxu0
    %635 = vrot.lane.b32.xlu0 %v171, 112
    %v636 = vpop.permute.xlu0 %635
    %v639 = vsel %vm299, %v602, 0
    %641 = vmatpush.msra.mxu0 0.0
    %642 = vmatpush.msra.mxu0 0.0
    %643 = vmatpush.msra.mxu0 0.0
    %644 = vmatpush.msra.mxu0 0.0
    %645 = vmatpush.msra.mxu0 0.0
    %646 = vmatpush.msra.mxu0 0.0
    %647 = vmatpush.msra.mxu0 0.0
    %648 = vmatpush.msra.mxu0 0.0
    %649 = vmatpush.msra.mxu0 0.0
    %650 = vmatpush.msra.mxu0 0.0
    %651 = vmatpush.msra.mxu0 0.0
    %652 = vmatpush.msra.mxu0 0.0
    %653 = vmatpush.msra.mxu0 0.0
    %654 = vmatpush.msra.mxu0 0.0
    %655 = vmatpush.msra.mxu0 0.0
    %656 = vmatpush.msra.mxu0 %v636
    %657 = vmatmul.f32.gmra.mxu0 %v639
    %v658 = vpop.f32.mrf.mxu0
    %v659 = vadd.f32 0.0, %v658
    %660 = vdwg.mxu0
    %661 = vrot.lane.b32.xlu0 %v191, 112
    %v662 = vpop.permute.xlu0 %661
    %v665 = vsel %vm299, %v603, 0
    %667 = vmatpush.msra.mxu0 0.0
    %668 = vmatpush.msra.mxu0 0.0
    %669 = vmatpush.msra.mxu0 0.0
    %670 = vmatpush.msra.mxu0 0.0
    %671 = vmatpush.msra.mxu0 0.0
    %672 = vmatpush.msra.mxu0 0.0
    %673 = vmatpush.msra.mxu0 0.0
    %674 = vmatpush.msra.mxu0 0.0
    %675 = vmatpush.msra.mxu0 0.0
    %676 = vmatpush.msra.mxu0 0.0
    %677 = vmatpush.msra.mxu0 0.0
    %678 = vmatpush.msra.mxu0 0.0
    %679 = vmatpush.msra.mxu0 0.0
    %680 = vmatpush.msra.mxu0 0.0
    %681 = vmatpush.msra.mxu0 0.0
    %682 = vmatpush.msra.mxu0 %v662
    %683 = vmatmul.f32.gmra.mxu0 %v665
    %v684 = vpop.f32.mrf.mxu0
    %v685 = vadd.f32 0.0, %v684
    %686 = vdwg.mxu0
    %687 = vrot.lane.b32.xlu0 %v211, 112
    %v688 = vpop.permute.xlu0 %687
    %v691 = vsel %vm299, %v604, 0
    %693 = vmatpush.msra.mxu0 0.0
    %694 = vmatpush.msra.mxu0 0.0
    %695 = vmatpush.msra.mxu0 0.0
    %696 = vmatpush.msra.mxu0 0.0
    %697 = vmatpush.msra.mxu0 0.0
    %698 = vmatpush.msra.mxu0 0.0
    %699 = vmatpush.msra.mxu0 0.0
    %700 = vmatpush.msra.mxu0 0.0
    %701 = vmatpush.msra.mxu0 0.0
    %702 = vmatpush.msra.mxu0 0.0
    %703 = vmatpush.msra.mxu0 0.0
    %704 = vmatpush.msra.mxu0 0.0
    %705 = vmatpush.msra.mxu0 0.0
    %706 = vmatpush.msra.mxu0 0.0
    %707 = vmatpush.msra.mxu0 0.0
    %708 = vmatpush.msra.mxu0 %v688
    %709 = vmatmul.f32.gmra.mxu0 %v691
    %v710 = vpop.f32.mrf.mxu0
    %v711 = vadd.f32 0.0, %v710
    %712 = vdwg.mxu0
    %713 = vrot.lane.b32.xlu0 %v234, 112
    %v714 = vpop.permute.xlu0 %713
    %v717 = vsel %vm299, %v605, 0
    %719 = vmatpush.msra.mxu0 0.0
    %720 = vmatpush.msra.mxu0 0.0
    %721 = vmatpush.msra.mxu0 0.0
    %722 = vmatpush.msra.mxu0 0.0
    %723 = vmatpush.msra.mxu0 0.0
    %724 = vmatpush.msra.mxu0 0.0
    %725 = vmatpush.msra.mxu0 0.0
    %726 = vmatpush.msra.mxu0 0.0
    %727 = vmatpush.msra.mxu0 0.0
    %728 = vmatpush.msra.mxu0 0.0
    %729 = vmatpush.msra.mxu0 0.0
    %730 = vmatpush.msra.mxu0 0.0
    %731 = vmatpush.msra.mxu0 0.0
    %732 = vmatpush.msra.mxu0 0.0
    %733 = vmatpush.msra.mxu0 0.0
    %734 = vmatpush.msra.mxu0 %v714
    %735 = vmatmul.f32.gmra.mxu0 %v717
    %v736 = vpop.f32.mrf.mxu0
    %v737 = vadd.f32 0.0, %v736
    %738 = vdwg.mxu0
    %739 = vrot.lane.b32.xlu0 %v254, 112
    %v740 = vpop.permute.xlu0 %739
    %v743 = vsel %vm299, %v606, 0
    %745 = vmatpush.msra.mxu0 0.0
    %746 = vmatpush.msra.mxu0 0.0
    %747 = vmatpush.msra.mxu0 0.0
    %748 = vmatpush.msra.mxu0 0.0
    %749 = vmatpush.msra.mxu0 0.0
    %750 = vmatpush.msra.mxu0 0.0
    %751 = vmatpush.msra.mxu0 0.0
    %752 = vmatpush.msra.mxu0 0.0
    %753 = vmatpush.msra.mxu0 0.0
    %754 = vmatpush.msra.mxu0 0.0
    %755 = vmatpush.msra.mxu0 0.0
    %756 = vmatpush.msra.mxu0 0.0
    %757 = vmatpush.msra.mxu0 0.0
    %758 = vmatpush.msra.mxu0 0.0
    %759 = vmatpush.msra.mxu0 0.0
    %760 = vmatpush.msra.mxu0 %v740
    %761 = vmatmul.f32.gmra.mxu0 %v743
    %v762 = vpop.f32.mrf.mxu0
    %v763 = vadd.f32 0.0, %v762
    %764 = vdwg.mxu0
    %765 = vrot.lane.b32.xlu0 %v274, 112
    %v766 = vpop.permute.xlu0 %765
    %v769 = vsel %vm299, %v607, 0
    %771 = vmatpush.msra.mxu0 0.0
    %772 = vmatpush.msra.mxu0 0.0
    %773 = vmatpush.msra.mxu0 0.0
    %774 = vmatpush.msra.mxu0 0.0
    %775 = vmatpush.msra.mxu0 0.0
    %776 = vmatpush.msra.mxu0 0.0
    %777 = vmatpush.msra.mxu0 0.0
    %778 = vmatpush.msra.mxu0 0.0
    %779 = vmatpush.msra.mxu0 0.0
    %780 = vmatpush.msra.mxu0 0.0
    %781 = vmatpush.msra.mxu0 0.0
    %782 = vmatpush.msra.mxu0 0.0
    %783 = vmatpush.msra.mxu0 0.0
    %784 = vmatpush.msra.mxu0 0.0
    %785 = vmatpush.msra.mxu0 0.0
    %786 = vmatpush.msra.mxu0 %v766
    %787 = vmatmul.f32.gmra.mxu0 %v769
    %v788 = vpop.f32.mrf.mxu0
    %v789 = vadd.f32 0.0, %v788
    %790 = vdwg.mxu0
    %791 = vrot.lane.b32.xlu0 %v294, 112
    %v792 = vpop.permute.xlu0 %791
    %v795 = vsel %vm299, %v608, 0
    %797 = vmatpush.msra.mxu0 0.0
    %798 = vmatpush.msra.mxu0 0.0
    %799 = vmatpush.msra.mxu0 0.0
    %800 = vmatpush.msra.mxu0 0.0
    %801 = vmatpush.msra.mxu0 0.0
    %802 = vmatpush.msra.mxu0 0.0
    %803 = vmatpush.msra.mxu0 0.0
    %804 = vmatpush.msra.mxu0 0.0
    %805 = vmatpush.msra.mxu0 0.0
    %806 = vmatpush.msra.mxu0 0.0
    %807 = vmatpush.msra.mxu0 0.0
    %808 = vmatpush.msra.mxu0 0.0
    %809 = vmatpush.msra.mxu0 0.0
    %810 = vmatpush.msra.mxu0 0.0
    %811 = vmatpush.msra.mxu0 0.0
    %812 = vmatpush.msra.mxu0 %v792
    %813 = vmatmul.f32.gmra.mxu0 %v795
    %v814 = vpop.f32.mrf.mxu0
    %v815 = vadd.f32 0.0, %v814
    %816 = vdwg.mxu0
    %v817 = vld [vmem:[%s2] sm:$0xff]
    %v818 = vld [vmem:[%s2 + $0x8] sm:$0xff]
    %v819 = vld [vmem:[%s2 + $0x10] sm:$0xff]
    %v820 = vld [vmem:[%s2 + $0x18] sm:$0xff]
    %v821 = vld [vmem:[%s2 + $0x20] sm:$0xff]
    %v822 = vld [vmem:[%s2 + $0x28] sm:$0xff]
    %v823 = vld [vmem:[%s2 + $0x30] sm:$0xff]
    %v824 = vld [vmem:[%s2 + $0x38] sm:$0xff]
    %v826 = vsel %vm299, %v633, 0
    %828 = vmatpush.msra.mxu0 0.0
    %829 = vmatpush.msra.mxu0 0.0
    %830 = vmatpush.msra.mxu0 0.0
    %831 = vmatpush.msra.mxu0 0.0
    %832 = vmatpush.msra.mxu0 0.0
    %833 = vmatpush.msra.mxu0 0.0
    %834 = vmatpush.msra.mxu0 0.0
    %835 = vmatpush.msra.mxu0 0.0
    %836 = vmatpush.msra.mxu0 0.0
    %837 = vmatpush.msra.mxu0 0.0
    %838 = vmatpush.msra.mxu0 0.0
    %839 = vmatpush.msra.mxu0 0.0
    %840 = vmatpush.msra.mxu0 0.0
    %841 = vmatpush.msra.mxu0 0.0
    %842 = vmatpush.msra.mxu0 0.0
    %843 = vmatpush.msra.mxu0 %v817
    %844 = vmatmul.f32.gmra.mxu0 %v826
    %v845 = vpop.f32.mrf.mxu0
    %v846 = vadd.f32 0.0, %v845
    %847 = vdwg.mxu0
    %v849 = vsel %vm299, %v659, 0
    %851 = vmatpush.msra.mxu0 0.0
    %852 = vmatpush.msra.mxu0 0.0
    %853 = vmatpush.msra.mxu0 0.0
    %854 = vmatpush.msra.mxu0 0.0
    %855 = vmatpush.msra.mxu0 0.0
    %856 = vmatpush.msra.mxu0 0.0
    %857 = vmatpush.msra.mxu0 0.0
    %858 = vmatpush.msra.mxu0 0.0
    %859 = vmatpush.msra.mxu0 0.0
    %860 = vmatpush.msra.mxu0 0.0
    %861 = vmatpush.msra.mxu0 0.0
    %862 = vmatpush.msra.mxu0 0.0
    %863 = vmatpush.msra.mxu0 0.0
    %864 = vmatpush.msra.mxu0 0.0
    %865 = vmatpush.msra.mxu0 0.0
    %866 = vmatpush.msra.mxu0 %v818
    %867 = vmatmul.f32.gmra.mxu0 %v849
    %v868 = vpop.f32.mrf.mxu0
    %v869 = vadd.f32 0.0, %v868
    %870 = vdwg.mxu0
    %v872 = vsel %vm299, %v685, 0
    %874 = vmatpush.msra.mxu0 0.0
    %875 = vmatpush.msra.mxu0 0.0
    %876 = vmatpush.msra.mxu0 0.0
    %877 = vmatpush.msra.mxu0 0.0
    %878 = vmatpush.msra.mxu0 0.0
    %879 = vmatpush.msra.mxu0 0.0
    %880 = vmatpush.msra.mxu0 0.0
    %881 = vmatpush.msra.mxu0 0.0
    %882 = vmatpush.msra.mxu0 0.0
    %883 = vmatpush.msra.mxu0 0.0
    %884 = vmatpush.msra.mxu0 0.0
    %885 = vmatpush.msra.mxu0 0.0
    %886 = vmatpush.msra.mxu0 0.0
    %887 = vmatpush.msra.mxu0 0.0
    %888 = vmatpush.msra.mxu0 0.0
    %889 = vmatpush.msra.mxu0 %v819
    %890 = vmatmul.f32.gmra.mxu0 %v872
    %v891 = vpop.f32.mrf.mxu0
    %v892 = vadd.f32 0.0, %v891
    %893 = vdwg.mxu0
    %v895 = vsel %vm299, %v711, 0
    %897 = vmatpush.msra.mxu0 0.0
    %898 = vmatpush.msra.mxu0 0.0
    %899 = vmatpush.msra.mxu0 0.0
    %900 = vmatpush.msra.mxu0 0.0
    %901 = vmatpush.msra.mxu0 0.0
    %902 = vmatpush.msra.mxu0 0.0
    %903 = vmatpush.msra.mxu0 0.0
    %904 = vmatpush.msra.mxu0 0.0
    %905 = vmatpush.msra.mxu0 0.0
    %906 = vmatpush.msra.mxu0 0.0
    %907 = vmatpush.msra.mxu0 0.0
    %908 = vmatpush.msra.mxu0 0.0
    %909 = vmatpush.msra.mxu0 0.0
    %910 = vmatpush.msra.mxu0 0.0
    %911 = vmatpush.msra.mxu0 0.0
    %912 = vmatpush.msra.mxu0 %v820
    %913 = vmatmul.f32.gmra.mxu0 %v895
    %v914 = vpop.f32.mrf.mxu0
    %v915 = vadd.f32 0.0, %v914
    %916 = vdwg.mxu0
    %v918 = vsel %vm299, %v737, 0
    %920 = vmatpush.msra.mxu0 0.0
    %921 = vmatpush.msra.mxu0 0.0
    %922 = vmatpush.msra.mxu0 0.0
    %923 = vmatpush.msra.mxu0 0.0
    %924 = vmatpush.msra.mxu0 0.0
    %925 = vmatpush.msra.mxu0 0.0
    %926 = vmatpush.msra.mxu0 0.0
    %927 = vmatpush.msra.mxu0 0.0
    %928 = vmatpush.msra.mxu0 0.0
    %929 = vmatpush.msra.mxu0 0.0
    %930 = vmatpush.msra.mxu0 0.0
    %931 = vmatpush.msra.mxu0 0.0
    %932 = vmatpush.msra.mxu0 0.0
    %933 = vmatpush.msra.mxu0 0.0
    %934 = vmatpush.msra.mxu0 0.0
    %935 = vmatpush.msra.mxu0 %v821
    %936 = vmatmul.f32.gmra.mxu0 %v918
    %v937 = vpop.f32.mrf.mxu0
    %v938 = vadd.f32 0.0, %v937
    %939 = vdwg.mxu0
    %v941 = vsel %vm299, %v763, 0
    %943 = vmatpush.msra.mxu0 0.0
    %944 = vmatpush.msra.mxu0 0.0
    %945 = vmatpush.msra.mxu0 0.0
    %946 = vmatpush.msra.mxu0 0.0
    %947 = vmatpush.msra.mxu0 0.0
    %948 = vmatpush.msra.mxu0 0.0
    %949 = vmatpush.msra.mxu0 0.0
    %950 = vmatpush.msra.mxu0 0.0
    %951 = vmatpush.msra.mxu0 0.0
    %952 = vmatpush.msra.mxu0 0.0
    %953 = vmatpush.msra.mxu0 0.0
    %954 = vmatpush.msra.mxu0 0.0
    %955 = vmatpush.msra.mxu0 0.0
    %956 = vmatpush.msra.mxu0 0.0
    %957 = vmatpush.msra.mxu0 0.0
    %958 = vmatpush.msra.mxu0 %v822
    %959 = vmatmul.f32.gmra.mxu0 %v941
    %v960 = vpop.f32.mrf.mxu0
    %v961 = vadd.f32 0.0, %v960
    %962 = vdwg.mxu0
    %v964 = vsel %vm299, %v789, 0
    %966 = vmatpush.msra.mxu0 0.0
    %967 = vmatpush.msra.mxu0 0.0
    %968 = vmatpush.msra.mxu0 0.0
    %969 = vmatpush.msra.mxu0 0.0
    %970 = vmatpush.msra.mxu0 0.0
    %971 = vmatpush.msra.mxu0 0.0
    %972 = vmatpush.msra.mxu0 0.0
    %973 = vmatpush.msra.mxu0 0.0
    %974 = vmatpush.msra.mxu0 0.0
    %975 = vmatpush.msra.mxu0 0.0
    %976 = vmatpush.msra.mxu0 0.0
    %977 = vmatpush.msra.mxu0 0.0
    %978 = vmatpush.msra.mxu0 0.0
    %979 = vmatpush.msra.mxu0 0.0
    %980 = vmatpush.msra.mxu0 0.0
    %981 = vmatpush.msra.mxu0 %v823
    %982 = vmatmul.f32.gmra.mxu0 %v964
    %v983 = vpop.f32.mrf.mxu0
    %v984 = vadd.f32 0.0, %v983
    %985 = vdwg.mxu0
    %v987 = vsel %vm299, %v815, 0
    %989 = vmatpush.msra.mxu0 0.0
    %990 = vmatpush.msra.mxu0 0.0
    %991 = vmatpush.msra.mxu0 0.0
    %992 = vmatpush.msra.mxu0 0.0
    %993 = vmatpush.msra.mxu0 0.0
    %994 = vmatpush.msra.mxu0 0.0
    %995 = vmatpush.msra.mxu0 0.0
    %996 = vmatpush.msra.mxu0 0.0
    %997 = vmatpush.msra.mxu0 0.0
    %998 = vmatpush.msra.mxu0 0.0
    %999 = vmatpush.msra.mxu0 0.0
    %1000 = vmatpush.msra.mxu0 0.0
    %1001 = vmatpush.msra.mxu0 0.0
    %1002 = vmatpush.msra.mxu0 0.0
    %1003 = vmatpush.msra.mxu0 0.0
    %1004 = vmatpush.msra.mxu0 %v824
    %1005 = vmatmul.f32.gmra.mxu0 %v987
    %v1006 = vpop.f32.mrf.mxu0
    %v1007 = vadd.f32 0.0, %v1006
    %1008 = vdwg.mxu0
    %v1009 = vsel %vm24, %v846, 0.0
    %v1010 = vsel %vm24, %v869, 0.0
    %v1011 = vadd.f32 %v1009, %v1010
    %v1012 = vsel %vm24, %v892, 0.0
    %v1013 = vadd.f32 %v1011, %v1012
    %v1014 = vsel %vm24, %v915, 0.0
    %v1015 = vadd.f32 %v1013, %v1014
    %v1016 = vsel %vm24, %v938, 0.0
    %v1017 = vsel %vm24, %v961, 0.0
    %v1018 = vadd.f32 %v1016, %v1017
    %v1019 = vsel %vm24, %v984, 0.0
    %v1020 = vadd.f32 %v1018, %v1019
    %v1021 = vsel %vm24, %v1007, 0.0
    %v1022 = vadd.f32 %v1020, %v1021
    %v1023 = vperm.slane %v23, 2
    %v1024 = vadd.f32 %v1015, %v1023
    %v1025 = vadd.f32 %v1022, %v1023
    %v1026 = vadd.f32 %v21, %v1024
    %v1027 = vadd.f32 %v22, %v1025
    %v1028 = vsel %vm24, %v1026, 0.0
    %1029 = vadd.xlane.f32.xlu0 %v1028
    %v1030 = vpop.xlane.xlu0 %1029
    %v1031 = vsel %vm24, %v1027, 0.0
    %1032 = vadd.xlane.f32.xlu0 %v1031
    %v1033 = vpop.xlane.xlu0 %1032
    %v1034 = vmul.f32 %v1030, %v37
    %v1035 = vmul.f32 %v1033, %v37
    %v1036 = vsub.f32 %v1026, %v1034
    %v1037 = vsub.f32 %v1027, %v1035
    %v1038 = vmul.f32 %v1036, %v1036
    %v1039 = vmul.f32 %v1037, %v1037
    %v1040 = vsel %vm24, %v1038, 0.0
    %1041 = vadd.xlane.f32.xlu0 %v1040
    %v1042 = vpop.xlane.xlu0 %1041
    %v1043 = vsel %vm24, %v1039, 0.0
    %1044 = vadd.xlane.f32.xlu0 %v1043
    %v1045 = vpop.xlane.xlu0 %1044
    %v1046 = vmul.f32 %v1042, %v37
    %v1047 = vmul.f32 %v1045, %v37
    %v1048 = vadd.f32 %v1046, 1e-05
    %v1049 = vadd.f32 %v1047, 1e-05
    %v1050 = vrsqrt.pop %v1048
    %v1051 = vmul.f32 %v1050, %v1048
    %v1052 = vmul.f32 %v1051, %v1050
    %v1053 = vmul.f32 0.5, %v1052
    %v1054 = vsub.f32 1.5, %v1053
    %v1055 = vmul.f32 %v1050, %v1054
    %vm1056 = vweird.f32 %v1048
    %vm1057 = vweird.f32 %v1050
    %vm1058 = vmor %vm1056, %vm1057
    %v1059 = vsel %vm1058, %v1050, %v1055
    %v1060 = vrsqrt.pop %v1049
    %v1061 = vmul.f32 %v1060, %v1049
    %v1062 = vmul.f32 %v1061, %v1060
    %v1063 = vmul.f32 0.5, %v1062
    %v1064 = vsub.f32 1.5, %v1063
    %v1065 = vmul.f32 %v1060, %v1064
    %vm1066 = vweird.f32 %v1049
    %vm1067 = vweird.f32 %v1060
    %vm1068 = vmor %vm1066, %vm1067
    %v1069 = vsel %vm1068, %v1060, %v1065
    %v1070 = vmul.f32 %v1036, %v1059
    %v1071 = vmul.f32 %v1037, %v1069
    %v1072 = vperm.slane %v23, 3
    %v1073 = vmul.f32 %v1070, %v1072
    %v1074 = vmul.f32 %v1071, %v1072
    %v1075 = vperm.slane %v23, 4
    %v1076 = vadd.f32 %v1073, %v1075
    %v1077 = vadd.f32 %v1074, %v1075
    %v1078 = vld [vmem:[%s3] sm:$0xff]
    %v1079 = vld [vmem:[%s3 + $0x10] sm:$0xff]
    %v1080 = vld [vmem:[%s3 + $0x20] sm:$0xff]
    %v1081 = vld [vmem:[%s3 + $0x30] sm:$0xff]
    %v1082 = vld [vmem:[%s3 + $0x8] sm:$0xff]
    %v1083 = vld [vmem:[%s3 + $0x18] sm:$0xff]
    %v1084 = vld [vmem:[%s3 + $0x28] sm:$0xff]
    %v1085 = vld [vmem:[%s3 + $0x38] sm:$0xff]
    %v1086 = vld [vmem:[%s3 + $0x48] sm:$0xff]
    %v1087 = vld [vmem:[%s3 + $0x58] sm:$0xff]
    %v1088 = vld [vmem:[%s3 + $0x68] sm:$0xff]
    %v1089 = vld [vmem:[%s3 + $0x78] sm:$0xff]
    %v1090 = vld [vmem:[%s3 + $0x88] sm:$0xff]
    %v1091 = vld [vmem:[%s3 + $0x98] sm:$0xff]
    %v1092 = vld [vmem:[%s3 + $0xa8] sm:$0xff]
    %v1093 = vld [vmem:[%s3 + $0xb8] sm:$0xff]
    %v1094 = vld [vmem:[%s3 + $0xc8] sm:$0xff]
    %v1095 = vld [vmem:[%s3 + $0xd8] sm:$0xff]
    %v1096 = vld [vmem:[%s3 + $0xe8] sm:$0xff]
    %v1097 = vld [vmem:[%s3 + $0xf8] sm:$0xff]
    %v1098 = vperm.slane %v23, 5
    %v1100 = vsel %vm24, %v1076, 0
    %v1103 = vsel %vm24, %v1077, 0
    %1105 = vmatpush.msra.mxu0 0.0
    %1106 = vmatpush.msra.mxu0 0.0
    %1107 = vmatpush.msra.mxu0 0.0
    %1108 = vmatpush.msra.mxu0 0.0
    %1109 = vmatpush.msra.mxu0 0.0
    %1110 = vmatpush.msra.mxu0 0.0
    %1111 = vmatpush.msra.mxu0 0.0
    %1112 = vmatpush.msra.mxu0 0.0
    %1113 = vmatpush.msra.mxu0 0.0
    %1114 = vmatpush.msra.mxu0 0.0
    %1115 = vmatpush.msra.mxu0 0.0
    %1116 = vmatpush.msra.mxu0 0.0
    %1117 = vmatpush.msra.mxu0 %v1081
    %1118 = vmatpush.msra.mxu0 %v1080
    %1119 = vmatpush.msra.mxu0 %v1079
    %1120 = vmatpush.msra.mxu0 %v1078
    %1121 = vmatmul.f32.gmra.mxu0 %v1100
    %v1122 = vpop.f32.mrf.mxu0
    %v1123 = vadd.f32 %v1098, %v1122
    %1124 = vmatmul.f32.gmra.mxu0 %v1103
    %v1125 = vpop.f32.mrf.mxu0
    %v1126 = vadd.f32 %v1098, %v1125
    %1127 = vdwg.mxu0
    %v1128 = vmul.f32 %v1123, %v1123
    %v1129 = vmul.f32 %v1126, %v1126
    %v1130 = vmul.f32 %v1123, %v1128
    %v1131 = vmul.f32 %v1126, %v1129
    %v1132 = vmul.f32 %v1130, 0.044715
    %v1133 = vmul.f32 %v1131, 0.044715
    %v1134 = vadd.f32 %v1123, %v1132
    %v1135 = vadd.f32 %v1126, %v1133
    %v1136 = vmul.f32 %v1134, 0.7978846
    %v1137 = vmul.f32 %v1135, 0.7978846
    %v1138 = vtanh.pop %v1136
    %v1139 = vtanh.pop %v1137
    %v1140 = vadd.f32 %v1138, 1.0
    %v1141 = vadd.f32 %v1139, 1.0
    %v1142 = vmul.f32 %v1140, 0.5
    %v1143 = vmul.f32 %v1141, 0.5
    %v1144 = vmul.f32 %v1123, %v1142
    %v1145 = vmul.f32 %v1126, %v1143
    %v1146 = vperm.slane %v23, 6
    %1147 = vmatpush.msra.mxu0 %v1097
    %1148 = vmatpush.msra.mxu0 %v1096
    %1149 = vmatpush.msra.mxu0 %v1095
    %1150 = vmatpush.msra.mxu0 %v1094
    %1151 = vmatpush.msra.mxu0 %v1093
    %1152 = vmatpush.msra.mxu0 %v1092
    %1153 = vmatpush.msra.mxu0 %v1091
    %1154 = vmatpush.msra.mxu0 %v1090
    %1155 = vmatpush.msra.mxu0 %v1089
    %1156 = vmatpush.msra.mxu0 %v1088
    %1157 = vmatpush.msra.mxu0 %v1087
    %1158 = vmatpush.msra.mxu0 %v1086
    %1159 = vmatpush.msra.mxu0 %v1085
    %1160 = vmatpush.msra.mxu0 %v1084
    %1161 = vmatpush.msra.mxu0 %v1083
    %1162 = vmatpush.msra.mxu0 %v1082
    %1163 = vmatmul.f32.gmra.mxu0 %v1144
    %v1164 = vpop.f32.mrf.mxu0
    %v1165 = vadd.f32 %v1146, %v1164
    %1166 = vmatmul.f32.gmra.mxu0 %v1145
    %v1167 = vpop.f32.mrf.mxu0
    %v1168 = vadd.f32 %v1146, %v1167
    %1169 = vdwg.mxu0
    %v1170 = vadd.f32 %v1026, %v1165
    %v1171 = vadd.f32 %v1027, %v1168
    %1172 = vst.msk [vmem:[#allocation2] sm:$0xff] %vm24, %v1170
    %1173 = vst.msk [vmem:[#allocation2 + $0x8] sm:$0xff] %vm24, %v1171
    // Predicated region
    $region22: #{tpu_custom_call.1} parent=1 // pred_check
      _
    $region23: #{tpu_custom_call.1} parent=1 // pred_check_branch
      %1175 = sbr.rel (0) target = $region25
    $region24: #{tpu_custom_call.1} parent=1 // pred_region
      %1177 = vsyncadd [#allocation3], 0
      %s1178 = sshll.u32 [#allocation2], 4
      %s1179 = int_to_ptr.vmem [resolvable:$true] %s1178
      %s1180 = sshll.u32 %s5, 4
      %s1181 = int_to_ptr.hbm [resolvable:$true] %s1180
      %1186 = dma.vmem_to_hbm [thread:$0]  %s1179, 256, %s1181, [#allocation3], 128, 128, 8
    $region25: #{tpu_custom_call.1} parent=1 // pred_fallthru
      _
    // Predicated region
    $region26: #{tpu_custom_call.1} parent=1 // pred_check
      _
    $region27: #{tpu_custom_call.1} parent=1 // pred_check_branch
      %1188 = sbr.rel (0) target = $region29
    $region28: #{tpu_custom_call.1} parent=1 // pred_region
      %1190 = dma.done [#allocation3], 256
    $region29: #{tpu_custom_call.1} parent=1 // pred_fallthru
      _
    %1191 = vsyncpa [#allocation3], 1

</llo_original>
